<compile_context>
chip_gen: v5e
topology: v5e:2x2
jax: 0.10.0
libtpu: 0.0.40
codegen_flags: <defaults>
</compile_context>

<pallas_src>
import functools

import jax
import jax.numpy as jnp
from jax.experimental import pallas as pl
from jax.experimental.pallas import tpu as pltpu


def _round_up(n, m):
    return ((n + m - 1) // m) * m


def _mlp_kernel(x_ref, w1_ref, b1_ref, w2_ref, b2_ref, o_ref):
    # Hidden layer: (TM, D_in) @ (D_in, H) -> f32 accumulate on the MXU.
    h = jnp.dot(x_ref[...], w1_ref[...], preferred_element_type=jnp.float32)
    # Bias + ReLU in f32 on the VPU.
    h = jnp.maximum(h + b1_ref[...], 0.0)
    # Output layer: (TM, H) @ (H, D_out), f32 accumulate.
    out = jnp.dot(h, w2_ref[...], preferred_element_type=jnp.float32)
    o_ref[...] = (out + b2_ref[...]).astype(o_ref.dtype)


@functools.partial(jax.jit, static_argnames=("tm",))
def eva_classifier_forward(x, w1, b1, w2, b2, *, tm=None):
    """Full MLP (linear1 -> relu -> linear2) in a single weight-stationary kernel.

    x:  (B, D_in)   float32
    w1: (D_in, H)   float32, b1: (1, H)     float32
    w2: (H, D_out)  float32, b2: (1, D_out) float32
    returns (B, D_out) float32

    tm: batch-tile rows per grid step.
        * None (default): one grid step over the whole batch — best on
          single-TensorCore chips (v5e/v6e) where extra steps only add the
          ~0.35 us/step fixed cost.
        * On v7x (2 TCs/chip) pass tm ~= ceil(B/2) rounded to a multiple of 8
          so both cores get a batch tile (grid axis is "parallel").
    """
    B, D_in = x.shape
    H = w1.shape[1]
    D_out = w2.shape[1]

    # Tile-size selection (shapes are static under jit).
    if tm is None or tm >= B:
        tm = B                      # single block; full-extent dim is legal
    else:
        tm = max(8, _round_up(tm, 8))
    grid_m = pl.cdiv(B, tm)         # partial last block is masked by Pallas

    # VMEM-budget guard for the weight-stationary design (v7x: 64 MiB physical,
    # 32 MiB default scoped). Resident set: weights/biases (single-buffered,
    # stationary) + double-buffered x and out tiles.
    resident_bytes = 4 * (w1.size + b1.size + w2.size + b2.size) \
        + 2 * 4 * tm * (D_in + D_out)
    assert resident_bytes < 24 * 1024 * 1024, (
        "weight-stationary MLP exceeds the VMEM budget at these sizes; "
        "tile D_in (K) with an f32 accumulator scratch instead")
    # TODO(synk): add a K-tiled variant (grid over D_in with acc scratch) for
    # layer sizes that trip the guard above.

    flops = 2 * B * (D_in * H + H * D_out)
    bytes_accessed = 4 * (x.size + w1.size + b1.size + w2.size + b2.size
                          + B * D_out)

    return pl.pallas_call(
        _mlp_kernel,
        out_shape=jax.ShapeDtypeStruct((B, D_out), jnp.float32),
        grid=(grid_m,),
        in_specs=[
            # Activations stream in (tm, D_in) tiles over the batch grid axis.
            pl.BlockSpec((tm, D_in), lambda i: (i, 0)),
            # Weights / biases are stationary: same block for every grid step.
            pl.BlockSpec((D_in, H), lambda i: (0, 0)),
            pl.BlockSpec((1, H), lambda i: (0, 0)),
            pl.BlockSpec((H, D_out), lambda i: (0, 0)),
            pl.BlockSpec((1, D_out), lambda i: (0, 0)),
        ],
        out_specs=pl.BlockSpec((tm, D_out), lambda i: (i, 0)),
        compiler_params=pltpu.CompilerParams(
            dimension_semantics=("parallel",)),
        cost_estimate=pl.CostEstimate(
            flops=flops, transcendentals=0, bytes_accessed=bytes_accessed),
    )(x, w1, b1, w2, b2)


def init_params(key, input_size, fc_filters, output_size):
    """One-time init, already in kernel layout: W as (in, out), b as (1, out).

    Mimics nn.Linear's U(-1/sqrt(fan_in), 1/sqrt(fan_in)). Doing layout /
    dtype prep here (not per forward) is part of the perf fix: parameters are
    static, so converting them every call was pure HBM overhead.
    """
    k1, k2, k3, k4 = jax.random.split(key, 4)
    lim1 = 1.0 / jnp.sqrt(jnp.float32(input_size))
    lim2 = 1.0 / jnp.sqrt(jnp.float32(fc_filters))
    w1 = jax.random.uniform(k1, (input_size, fc_filters), jnp.float32, -lim1, lim1)
    b1 = jax.random.uniform(k2, (1, fc_filters), jnp.float32, -lim1, lim1)
    w2 = jax.random.uniform(k3, (fc_filters, output_size), jnp.float32, -lim2, lim2)
    b2 = jax.random.uniform(k4, (1, output_size), jnp.float32, -lim2, lim2)
    return w1, b1, w2, b2


if __name__ == "__main__":
    # Small shapes consistent with the module: input_size, config['fc_filters'],
    # output_size=2. Batch chosen non-multiple of 8 / of the tile to exercise
    # both the masked partial-last-block path and the single-block path.
    B, INPUT_SIZE, FC_FILTERS, OUTPUT_SIZE = 100, 256, 64, 2

    key = jax.random.PRNGKey(0)
    kx, kp = jax.random.split(key)
    x = jax.random.normal(kx, (B, INPUT_SIZE), jnp.float32)
    w1, b1, w2, b2 = init_params(kp, INPUT_SIZE, FC_FILTERS, OUTPUT_SIZE)

    # (a) multi-step grid, tm=32 -> 4 steps, last block masked (100 = 3*32 + 4)
    out_tiled = eva_classifier_forward(x, w1, b1, w2, b2, tm=32)
    # (b) default single-block grid (v5e/v6e preference)
    out_single = eva_classifier_forward(x, w1, b1, w2, b2)
    jax.block_until_ready((out_tiled, out_single))

    # Pure-JAX f32 reference.
    ref = jnp.maximum(x @ w1 + b1, 0.0) @ w2 + b2
    for out in (out_tiled, out_single):
        assert out.shape == (B, OUTPUT_SIZE)
        assert jnp.allclose(out, ref, atol=1e-2, rtol=1e-2), (
            float(jnp.max(jnp.abs(out - ref))))

    print("KERNEL_OK")
</pallas_src>

<mosaic_0001>
module attributes {stable_mosaic.version = 11 : i64} {
  func.func @_mlp_kernel(%arg0: i32, %arg1: memref<32x256xf32, #tpu.memory_space<vmem>>, %arg2: memref<256x64xf32, #tpu.memory_space<vmem>>, %arg3: memref<1x64xf32, #tpu.memory_space<vmem>>, %arg4: memref<64x2xf32, #tpu.memory_space<vmem>>, %arg5: memref<1x2xf32, #tpu.memory_space<vmem>>, %arg6: memref<32x2xf32, #tpu.memory_space<vmem>>) attributes {dimension_semantics = [#tpu.dimension_semantics<parallel>], iteration_bounds = array<i64: 4>, scalar_prefetch = 0 : i64, scratch_operands = 0 : i64, tpu.core_type = #tpu.core_type<tc>, window_params = [{transform_indices = @transform_0, window_bounds = array<i64: 32, 256>}, {pipeline_mode = #tpu.pipeline_mode<synchronous>, transform_indices = @transform_1, window_bounds = array<i64: 256, 64>}, {pipeline_mode = #tpu.pipeline_mode<synchronous>, transform_indices = @transform_2, window_bounds = array<i64: 1, 64>}, {pipeline_mode = #tpu.pipeline_mode<synchronous>, transform_indices = @transform_3, window_bounds = array<i64: 64, 2>}, {pipeline_mode = #tpu.pipeline_mode<synchronous>, transform_indices = @transform_4, window_bounds = array<i64: 1, 2>}, {transform_indices = @transform_5, window_bounds = array<i64: 32, 2>}]} {
    %c0 = arith.constant 0 : index
    %c0_0 = arith.constant 0 : index
    %0 = vector.load %arg1[%c0, %c0_0] : memref<32x256xf32, #tpu.memory_space<vmem>>, vector<32x256xf32>
    %c0_1 = arith.constant 0 : index
    %c0_2 = arith.constant 0 : index
    %1 = vector.load %arg2[%c0_1, %c0_2] : memref<256x64xf32, #tpu.memory_space<vmem>>, vector<256x64xf32>
    %cst = arith.constant dense<0.000000e+00> : vector<32x64xf32>
    %2 = tpu.matmul %0, %1, %cst {dimension_numbers = #tpu.dot_dimension_numbers<[1], [0], [0], [1], [0, 0, 1, 1], [], []>} : vector<32x256xf32>, vector<256x64xf32>, vector<32x64xf32> -> vector<32x64xf32>
    %c0_3 = arith.constant 0 : index
    %c0_4 = arith.constant 0 : index
    %3 = vector.load %arg3[%c0_3, %c0_4] : memref<1x64xf32, #tpu.memory_space<vmem>>, vector<1x64xf32>
    %4 = vector.broadcast %3 : vector<1x64xf32> to vector<32x64xf32>
    %5 = arith.addf %2, %4 : vector<32x64xf32>
    %cst_5 = arith.constant 0.000000e+00 : f32
    %6 = vector.broadcast %cst_5 : f32 to vector<32x64xf32>
    %7 = arith.maximumf %5, %6 : vector<32x64xf32>
    %c0_6 = arith.constant 0 : index
    %c0_7 = arith.constant 0 : index
    %8 = vector.load %arg4[%c0_6, %c0_7] : memref<64x2xf32, #tpu.memory_space<vmem>>, vector<64x2xf32>
    %cst_8 = arith.constant dense<0.000000e+00> : vector<32x2xf32>
    %9 = tpu.matmul %7, %8, %cst_8 {dimension_numbers = #tpu.dot_dimension_numbers<[1], [0], [0], [1], [0, 0, 1, 1], [], []>} : vector<32x64xf32>, vector<64x2xf32>, vector<32x2xf32> -> vector<32x2xf32>
    %c0_9 = arith.constant 0 : index
    %c0_10 = arith.constant 0 : index
    %10 = vector.load %arg5[%c0_9, %c0_10] : memref<1x2xf32, #tpu.memory_space<vmem>>, vector<1x2xf32>
    %11 = vector.broadcast %10 : vector<1x2xf32> to vector<32x2xf32>
    %12 = arith.addf %9, %11 : vector<32x2xf32>
    %c0_11 = arith.constant 0 : index
    %c0_12 = arith.constant 0 : index
    %13 = vector.load %arg6[%c0_11, %c0_12] : memref<32x2xf32, #tpu.memory_space<vmem>>, vector<32x2xf32>
    tpu.vector_store %arg6[%c0_11, %c0_12], %12 {strides = array<i32>} : memref<32x2xf32, #tpu.memory_space<vmem>>, vector<32x2xf32>,
    return
  }
  func.func @transform_0(%arg0: i32) -> (i32, i32) {
    %c0_i32 = arith.constant 0 : i32
    %c0_i32_0 = arith.constant 0 : i32
    return %arg0, %c0_i32 : i32, i32
  }
  func.func @transform_1(%arg0: i32) -> (i32, i32) {
    %c0_i32 = arith.constant 0 : i32
    %c0_i32_0 = arith.constant 0 : i32
    %c0_i32_1 = arith.constant 0 : i32
    return %c0_i32, %c0_i32_0 : i32, i32
  }
  func.func @transform_2(%arg0: i32) -> (i32, i32) {
    %c0_i32 = arith.constant 0 : i32
    %c0_i32_0 = arith.constant 0 : i32
    %c0_i32_1 = arith.constant 0 : i32
    return %c0_i32, %c0_i32_0 : i32, i32
  }
  func.func @transform_3(%arg0: i32) -> (i32, i32) {
    %c0_i32 = arith.constant 0 : i32
    %c0_i32_0 = arith.constant 0 : i32
    %c0_i32_1 = arith.constant 0 : i32
    return %c0_i32, %c0_i32_0 : i32, i32
  }
  func.func @transform_4(%arg0: i32) -> (i32, i32) {
    %c0_i32 = arith.constant 0 : i32
    %c0_i32_0 = arith.constant 0 : i32
    %c0_i32_1 = arith.constant 0 : i32
    return %c0_i32, %c0_i32_0 : i32, i32
  }
  func.func @transform_5(%arg0: i32) -> (i32, i32) {
    %c0_i32 = arith.constant 0 : i32
    %c0_i32_0 = arith.constant 0 : i32
    return %arg0, %c0_i32 : i32, i32
  }
}

</mosaic_0001>

<llo_original>
// kernel: eva_classifier_forward.1
$region0: #{eva_classifier_forward.1}
  #allocation0 [shape = 'u32[]', space=smem, size = 0x4, offset = 0x4, fixed_abs, tag = 'smem constant byte address 0x4 - core index']
  #allocation1 [shape = 'u32[72,128]{1,0:T(1,128)}', space=vmem, size = 0x9000, scoped, tag = 'internal scratch']
  %s0 = inlined_call_operand.vmem [shape: f32[100,256], index: 0, kind: input, shape index: {}]
  %s1 = inlined_call_operand.vmem [shape: f32[256,64], index: 1, kind: input, shape index: {}]
  %s2 = inlined_call_operand.vmem [shape: f32[1,64], index: 2, kind: input, shape index: {}]
  %s3 = inlined_call_operand.vmem [shape: f32[64,2], index: 3, kind: input, shape index: {}]
  %s4 = inlined_call_operand.vmem [shape: f32[1,2], index: 4, kind: input, shape index: {}]
  %s5 = inlined_call_operand.vmem [shape: f32[100,2], index: 5, kind: output, shape index: {}]
  %s6 = sld [smem:[#allocation0]]
  $region101: #{eva_classifier_forward.1} parent=0
    _
  %s8 = ssub.s32 1, %s6
  %s9 = scalar_select 0, %s8, %s6
  $region1: #{eva_classifier_forward.1} parent=0
    #allocation2 [shape = 'u8[32768]{0}', space=vmem, size = 0x8000, scoped, tag = 'output window, operand 0']
    loop: start=0, step=1, limit=6
    $region2: #{eva_classifier_forward.1} parent=1 // loop_pre_header
      _
    $region3: #{eva_classifier_forward.1} parent=1 // loop_header
      %s11 = sphi 0, %s15
      %p12 = scmp.ge.s32.totalorder %s11, 6
      %s21 = sphi 0, %s23
      %s24 = sphi 0, %s21
      %s25 = sphi 0, %s24
      %s41 = sphi 0, %s25
      %s45 = sphi 0, %s45
      %s47 = sphi 0, %s45
      %s48 = sphi 0, %s47
      %s62 = sphi 0, %s48
      %s66 = sphi 0, %s66
      %s68 = sphi 0, %s66
      %s69 = sphi 0, %s68
      %s83 = sphi 0, %s69
      %s87 = sphi 0, %s87
      %s89 = sphi 0, %s87
      %s90 = sphi 0, %s89
      %s104 = sphi 0, %s90
      %s108 = sphi 0, %s108
      %s110 = sphi 0, %s108
      %s111 = sphi 0, %s110
      %s125 = sphi 0, %s111
      %s131 = sphi 0, %s133
      %s134 = sphi 0, %s131
      %s135 = sphi 0, %s134
      %s151 = sphi 0, %s135
    $region4: #{eva_classifier_forward.1} parent=1 // loop_header_branch
      %14 = sbr.rel (%p12) target = $region8
    $region5: #{eva_classifier_forward.1} parent=1 // loop_body
      %s16 = ssub.s32 %s11, 1
      %s17 = ssub.s32 %s11, 2
      %s18 = sadd.s32 %s11, 1
      %s19 = ssub.s32 %s11, %s18
      %p20 = scmp.eq.s32.totalorder %s19, 0
      %s22 = sadd.s32 %s21, 1
      %s23 = scalar_select %p20, %s21, %s22
      %p26 = pneg %p20
      %p27 = scmp.eq.s32.totalorder %s11, 3
      %p28 = por %p26, %p27
      %p29 = scmp.ne.s32.totalorder %s21, %s24
      %p30 = scmp.eq.s32.totalorder %s11, 0
      %p31 = por %p29, %p30
      %p32 = scmp.ne.s32.totalorder %s21, %s24
      %p33 = scmp.eq.s32.totalorder %s16, 3
      %p34 = por %p32, %p33
      %p35 = scmp.ne.s32.totalorder %s24, %s25
      %p36 = scmp.eq.s32.totalorder %s16, 0
      %p37 = por %p35, %p36
      %p38 = scmp.ne.s32.totalorder %s24, %s25
      %p39 = scmp.eq.s32.totalorder %s17, 3
      %p40 = por %p38, %p39
      %p42 = scmp.ne.s32.totalorder %s25, %s41
      %p43 = scmp.eq.s32.totalorder %s17, 0
      %p44 = por %p42, %p43
      %s46 = sadd.s32 %s45, 1
      %p49 = scmp.eq.s32.totalorder %s11, 3
      %p50 = scmp.ne.s32.totalorder %s45, %s47
      %p51 = scmp.eq.s32.totalorder %s11, 0
      %p52 = por %p50, %p51
      %p53 = scmp.ne.s32.totalorder %s45, %s47
      %p54 = scmp.eq.s32.totalorder %s16, 3
      %p55 = por %p53, %p54
      %p56 = scmp.ne.s32.totalorder %s47, %s48
      %p57 = scmp.eq.s32.totalorder %s16, 0
      %p58 = por %p56, %p57
      %p59 = scmp.ne.s32.totalorder %s47, %s48
      %p60 = scmp.eq.s32.totalorder %s17, 3
      %p61 = por %p59, %p60
      %p63 = scmp.ne.s32.totalorder %s48, %s62
      %p64 = scmp.eq.s32.totalorder %s17, 0
      %p65 = por %p63, %p64
      %s67 = sadd.s32 %s66, 1
      %p70 = scmp.eq.s32.totalorder %s11, 3
      %p71 = scmp.ne.s32.totalorder %s66, %s68
      %p72 = scmp.eq.s32.totalorder %s11, 0
      %p73 = por %p71, %p72
      %p74 = scmp.ne.s32.totalorder %s66, %s68
      %p75 = scmp.eq.s32.totalorder %s16, 3
      %p76 = por %p74, %p75
      %p77 = scmp.ne.s32.totalorder %s68, %s69
      %p78 = scmp.eq.s32.totalorder %s16, 0
      %p79 = por %p77, %p78
      %p80 = scmp.ne.s32.totalorder %s68, %s69
      %p81 = scmp.eq.s32.totalorder %s17, 3
      %p82 = por %p80, %p81
      %p84 = scmp.ne.s32.totalorder %s69, %s83
      %p85 = scmp.eq.s32.totalorder %s17, 0
      %p86 = por %p84, %p85
      %s88 = sadd.s32 %s87, 1
      %p91 = scmp.eq.s32.totalorder %s11, 3
      %p92 = scmp.ne.s32.totalorder %s87, %s89
      %p93 = scmp.eq.s32.totalorder %s11, 0
      %p94 = por %p92, %p93
      %p95 = scmp.ne.s32.totalorder %s87, %s89
      %p96 = scmp.eq.s32.totalorder %s16, 3
      %p97 = por %p95, %p96
      %p98 = scmp.ne.s32.totalorder %s89, %s90
      %p99 = scmp.eq.s32.totalorder %s16, 0
      %p100 = por %p98, %p99
      %p101 = scmp.ne.s32.totalorder %s89, %s90
      %p102 = scmp.eq.s32.totalorder %s17, 3
      %p103 = por %p101, %p102
      %p105 = scmp.ne.s32.totalorder %s90, %s104
      %p106 = scmp.eq.s32.totalorder %s17, 0
      %p107 = por %p105, %p106
      %s109 = sadd.s32 %s108, 1
      %p112 = scmp.eq.s32.totalorder %s11, 3
      %p113 = scmp.ne.s32.totalorder %s108, %s110
      %p114 = scmp.eq.s32.totalorder %s11, 0
      %p115 = por %p113, %p114
      %p116 = scmp.ne.s32.totalorder %s108, %s110
      %p117 = scmp.eq.s32.totalorder %s16, 3
      %p118 = por %p116, %p117
      %p119 = scmp.ne.s32.totalorder %s110, %s111
      %p120 = scmp.eq.s32.totalorder %s16, 0
      %p121 = por %p119, %p120
      %p122 = scmp.ne.s32.totalorder %s110, %s111
      %p123 = scmp.eq.s32.totalorder %s17, 3
      %p124 = por %p122, %p123
      %p126 = scmp.ne.s32.totalorder %s111, %s125
      %p127 = scmp.eq.s32.totalorder %s17, 0
      %p128 = por %p126, %p127
      %s129 = ssub.s32 %s11, %s18
      %p130 = scmp.eq.s32.totalorder %s129, 0
      %s132 = sadd.s32 %s131, 1
      %s133 = scalar_select %p130, %s131, %s132
      %p136 = pneg %p130
      %p137 = scmp.eq.s32.totalorder %s11, 3
      %p138 = por %p136, %p137
      %p139 = scmp.ne.s32.totalorder %s131, %s134
      %p140 = scmp.eq.s32.totalorder %s11, 0
      %p141 = por %p139, %p140
      %p142 = scmp.ne.s32.totalorder %s131, %s134
      %p143 = scmp.eq.s32.totalorder %s16, 3
      %p144 = por %p142, %p143
      %p145 = scmp.ne.s32.totalorder %s134, %s135
      %p146 = scmp.eq.s32.totalorder %s16, 0
      %p147 = por %p145, %p146
      %p148 = scmp.ne.s32.totalorder %s134, %s135
      %p149 = scmp.eq.s32.totalorder %s17, 3
      %p150 = por %p148, %p149
      %p152 = scmp.ne.s32.totalorder %s135, %s151
      %p153 = scmp.eq.s32.totalorder %s17, 0
      %p154 = por %p152, %p153
      %p155 = scmp.le.s32.totalorder 1, %s11
      %p156 = scmp.lt.s32.totalorder %s11, 5
      %p157 = pnand %p155, %p156
      %p158 = pneg %p157
      // Predicated region
      $region9: #{eva_classifier_forward.1} parent=5 // pred_check
        _
      $region10: #{eva_classifier_forward.1} parent=5 // pred_check_branch
        %160 = sbr.rel (%p157) target = $region12
      $region11: #{eva_classifier_forward.1} parent=5 // pred_region
        %s161 = ssub.s32 %s11, 1
        // Predicated region
        $region13: #{eva_classifier_forward.1} parent=11 // pred_check
          %p162 = pneg %p58
        $region14: #{eva_classifier_forward.1} parent=11 // pred_check_branch
          %164 = sbr.rel (%p162) target = $region16
        $region15: #{eva_classifier_forward.1} parent=11 // pred_region
          _
        $region16: #{eva_classifier_forward.1} parent=11 // pred_fallthru
          _
        // Predicated region
        $region17: #{eva_classifier_forward.1} parent=11 // pred_check
          %p165 = pneg %p79
        $region18: #{eva_classifier_forward.1} parent=11 // pred_check_branch
          %167 = sbr.rel (%p165) target = $region20
        $region19: #{eva_classifier_forward.1} parent=11 // pred_region
          _
        $region20: #{eva_classifier_forward.1} parent=11 // pred_fallthru
          _
        // Predicated region
        $region21: #{eva_classifier_forward.1} parent=11 // pred_check
          %p168 = pneg %p100
        $region22: #{eva_classifier_forward.1} parent=11 // pred_check_branch
          %170 = sbr.rel (%p168) target = $region24
        $region23: #{eva_classifier_forward.1} parent=11 // pred_region
          _
        $region24: #{eva_classifier_forward.1} parent=11 // pred_fallthru
          _
        // Predicated region
        $region25: #{eva_classifier_forward.1} parent=11 // pred_check
          %p171 = pneg %p121
        $region26: #{eva_classifier_forward.1} parent=11 // pred_check_branch
          %173 = sbr.rel (%p171) target = $region28
        $region27: #{eva_classifier_forward.1} parent=11 // pred_region
          _
        $region28: #{eva_classifier_forward.1} parent=11 // pred_fallthru
          _
      $region12: #{eva_classifier_forward.1} parent=5 // pred_fallthru
        _
      %p174 = scmp.lt.s32.totalorder %s11, 4
      // Predicated region
      $region29: #{eva_classifier_forward.1} parent=5 // pred_check
        %p175 = pneg %p174
      $region30: #{eva_classifier_forward.1} parent=5 // pred_check_branch
        %177 = sbr.rel (%p175) target = $region32
      $region31: #{eva_classifier_forward.1} parent=5 // pred_region
        // Predicated region
        $region33: #{eva_classifier_forward.1} parent=31 // pred_check
          %p178 = pneg %p31
        $region34: #{eva_classifier_forward.1} parent=31 // pred_check_branch
          %180 = sbr.rel (%p178) target = $region36
        $region35: #{eva_classifier_forward.1} parent=31 // pred_region
          %s181 = smul.u32 4, %s11
          %s182 = ssub.s32 13, %s181
          %p183 = scmp.lt.s32.totalorder %s182, 4
          %s184 = scalar_select %p183, %s182, 4
          %s185 = smul.u32 8, %s184
          %s186 = smul.u32 %s185, 2
          %p187 = scmp.lt.s32.totalorder %s181, 12
          %s188 = scalar_select %p187, %s181, 12
          %s189 = smul.addr %s188, 2
          %s190 = smul.addr %s189, 8
          %s191 = scalar_lea.vmem %s0, %s190
          %s192 = smul.u32 4, %s11
          %s193 = ssub.s32 13, %s192
          %p194 = scmp.lt.s32.totalorder %s193, 4
          %s195 = scalar_select %p194, %s193, 4
          %s196 = smul.u32 8, %s195
          %s197 = smul.u32 %s196, 2
        $region36: #{eva_classifier_forward.1} parent=31 // pred_fallthru
          _
      $region32: #{eva_classifier_forward.1} parent=5 // pred_fallthru
        _
      %p198 = scmp.le.s32.totalorder 1, %s11
      %p199 = scmp.lt.s32.totalorder %s11, 5
      %p200 = pnand %p198, %p199
      %p201 = pneg %p200
      // Predicated region
      $region37: #{eva_classifier_forward.1} parent=5 // pred_check
        _
      $region38: #{eva_classifier_forward.1} parent=5 // pred_check_branch
        %203 = sbr.rel (%p200) target = $region40
      $region39: #{eva_classifier_forward.1} parent=5 // pred_region
        %s204 = ssub.s32 %s11, 1
        %s205 = smul.u32 4, %s16
        %s206 = ssub.s32 13, %s205
        %p207 = scmp.lt.s32.totalorder %s206, 4
        %s208 = scalar_select %p207, %s206, 4
        %s209 = smul.u32 8, %s208
        %s210 = smul.u32 %s209, 2
        %p211 = scmp.lt.s32.totalorder %s205, 12
        %s212 = scalar_select %p211, %s205, 12
        %s213 = smul.addr %s212, 2
        %s214 = smul.addr %s213, 8
        %s215 = scalar_lea.vmem %s0, %s214
        %p216 = pneg %p37
        %p217 = pneg %p34
        %p218 = pneg %p58
        %p219 = pneg %p55
        %p220 = pneg %p79
        %p221 = pneg %p76
        %p222 = pneg %p100
        %p223 = pneg %p97
        %p224 = pneg %p121
        %p225 = pneg %p118
        %p226 = pneg %p147
        %p227 = pneg %p144
        %s228 = sand.u32 %s134, 1
        %s229 = sand.u32 %s134, 1
        %s230 = smul.addr %s229, 32
        %s231 = scalar_lea.vmem [#allocation2], %s230
        %s232 = smul.u32 4, %s16
        %s233 = ssub.s32 13, %s232
        %p234 = scmp.lt.s32.totalorder %s233, 4
        %s235 = scalar_select %p234, %s233, 4
        %s236 = smul.u32 8, %s235
        %s237 = smul.u32 %s236, 2
        %p238 = scmp.lt.s32.totalorder %s232, 12
        %s239 = scalar_select %p238, %s232, 12
        %s240 = smul.addr %s239, 2
        %s241 = smul.addr %s240, 8
        %s242 = scalar_lea.vmem %s0, %s241
        %s243 = smul.u32 4, %s16
        %s244 = ssub.s32 13, %s243
        %p245 = scmp.lt.s32.totalorder %s244, 4
        %s246 = scalar_select %p245, %s244, 4
        %s247 = smul.u32 8, %s246
        %s248 = smul.u32 %s247, 2
        %s249 = smul.u32 4, %s16
        %s250 = ssub.s32 13, %s249
        %p251 = scmp.lt.s32.totalorder %s250, 4
        %s252 = scalar_select %p251, %s250, 4
        %s253 = smul.u32 8, %s252
        %v254 = vld [vmem:[%s242] sm:$0xff]
        %v255 = vld [vmem:[%s242 + $0x8] sm:$0xff]
        %v256 = vld [vmem:[%s242 + $0x10] sm:$0xff]
        %v257 = vld [vmem:[%s242 + $0x18] sm:$0xff]
        %v258 = vld [vmem:[%s242 + $0x20] sm:$0xff]
        %v259 = vld [vmem:[%s242 + $0x28] sm:$0xff]
        %v260 = vld [vmem:[%s242 + $0x30] sm:$0xff]
        %v261 = vld [vmem:[%s242 + $0x38] sm:$0xff]
        %v262 = vld [vmem:[%s1] sm:$0xff]
        %v263 = vld [vmem:[%s1 + $0x8] sm:$0xff]
        %v264 = vld [vmem:[%s1 + $0x10] sm:$0xff]
        %v265 = vld [vmem:[%s1 + $0x18] sm:$0xff]
        %v266 = vld [vmem:[%s1 + $0x20] sm:$0xff]
        %v267 = vld [vmem:[%s1 + $0x28] sm:$0xff]
        %v268 = vld [vmem:[%s1 + $0x30] sm:$0xff]
        %v269 = vld [vmem:[%s1 + $0x38] sm:$0xff]
        %v270 = vld [vmem:[%s1 + $0x40] sm:$0xff]
        %v271 = vld [vmem:[%s1 + $0x48] sm:$0xff]
        %v272 = vld [vmem:[%s1 + $0x50] sm:$0xff]
        %v273 = vld [vmem:[%s1 + $0x58] sm:$0xff]
        %v274 = vld [vmem:[%s1 + $0x60] sm:$0xff]
        %v275 = vld [vmem:[%s1 + $0x68] sm:$0xff]
        %v276 = vld [vmem:[%s1 + $0x70] sm:$0xff]
        %v277 = vld [vmem:[%s1 + $0x78] sm:$0xff]
        %v278 = vld [vmem:[%s1 + $0x80] sm:$0xff]
        %v279 = vld [vmem:[%s1 + $0x88] sm:$0xff]
        %v280 = vld [vmem:[%s1 + $0x90] sm:$0xff]
        %v281 = vld [vmem:[%s1 + $0x98] sm:$0xff]
        %v282 = vld [vmem:[%s1 + $0xa0] sm:$0xff]
        %v283 = vld [vmem:[%s1 + $0xa8] sm:$0xff]
        %v284 = vld [vmem:[%s1 + $0xb0] sm:$0xff]
        %v285 = vld [vmem:[%s1 + $0xb8] sm:$0xff]
        %v286 = vld [vmem:[%s1 + $0xc0] sm:$0xff]
        %v287 = vld [vmem:[%s1 + $0xc8] sm:$0xff]
        %v288 = vld [vmem:[%s1 + $0xd0] sm:$0xff]
        %v289 = vld [vmem:[%s1 + $0xd8] sm:$0xff]
        %v290 = vld [vmem:[%s1 + $0xe0] sm:$0xff]
        %v291 = vld [vmem:[%s1 + $0xe8] sm:$0xff]
        %v292 = vld [vmem:[%s1 + $0xf0] sm:$0xff]
        %v293 = vld [vmem:[%s1 + $0xf8] sm:$0xff]
        %v294 = vld [vmem:[%s2] sm:$0x1]
        %v296 = vperm.slane %v294, 0
        %298 = vmatpush.msra.mxu0 %v277
        %299 = vmatpush.msra.mxu0 %v276
        %300 = vmatpush.msra.mxu0 %v275
        %301 = vmatpush.msra.mxu0 %v274
        %302 = vmatpush.msra.mxu0 %v273
        %303 = vmatpush.msra.mxu0 %v272
        %304 = vmatpush.msra.mxu0 %v271
        %305 = vmatpush.msra.mxu0 %v270
        %306 = vmatpush.msra.mxu0 %v269
        %307 = vmatpush.msra.mxu0 %v268
        %308 = vmatpush.msra.mxu0 %v267
        %309 = vmatpush.msra.mxu0 %v266
        %310 = vmatpush.msra.mxu0 %v265
        %311 = vmatpush.msra.mxu0 %v264
        %312 = vmatpush.msra.mxu0 %v263
        %313 = vmatpush.msra.mxu0 %v262
        %314 = vmatmul.f32.gmra.mxu0 %v254
        %v315 = vpop.f32.mrf.mxu0
        %v316 = vadd.f32 %v296, %v315
        %317 = vmatmul.f32.gmra.mxu0 %v256
        %v318 = vpop.f32.mrf.mxu0
        %v319 = vadd.f32 %v296, %v318
        %320 = vmatmul.f32.gmra.mxu0 %v258
        %v321 = vpop.f32.mrf.mxu0
        %v322 = vadd.f32 %v296, %v321
        %323 = vmatmul.f32.gmra.mxu0 %v260
        %v324 = vpop.f32.mrf.mxu0
        %v325 = vadd.f32 %v296, %v324
        %326 = vdwg.mxu0
        %327 = vmatpush.msra.mxu0 %v293
        %328 = vmatpush.msra.mxu0 %v292
        %329 = vmatpush.msra.mxu0 %v291
        %330 = vmatpush.msra.mxu0 %v290
        %331 = vmatpush.msra.mxu0 %v289
        %332 = vmatpush.msra.mxu0 %v288
        %333 = vmatpush.msra.mxu0 %v287
        %334 = vmatpush.msra.mxu0 %v286
        %335 = vmatpush.msra.mxu0 %v285
        %336 = vmatpush.msra.mxu0 %v284
        %337 = vmatpush.msra.mxu0 %v283
        %338 = vmatpush.msra.mxu0 %v282
        %339 = vmatpush.msra.mxu0 %v281
        %340 = vmatpush.msra.mxu0 %v280
        %341 = vmatpush.msra.mxu0 %v279
        %342 = vmatpush.msra.mxu0 %v278
        %343 = vmatmul.f32.gmra.mxu0 %v255
        %v344 = vpop.f32.mrf.mxu0
        %v345 = vadd.f32 %v316, %v344
        %346 = vmatmul.f32.gmra.mxu0 %v257
        %v347 = vpop.f32.mrf.mxu0
        %v348 = vadd.f32 %v319, %v347
        %349 = vmatmul.f32.gmra.mxu0 %v259
        %v350 = vpop.f32.mrf.mxu0
        %v351 = vadd.f32 %v322, %v350
        %352 = vmatmul.f32.gmra.mxu0 %v261
        %v353 = vpop.f32.mrf.mxu0
        %v354 = vadd.f32 %v325, %v353
        %355 = vdwg.mxu0
        %v356 = vmax.f32 %v345, 0.0
        %v357 = vmax.f32 %v348, 0.0
        %v358 = vmax.f32 %v351, 0.0
        %v359 = vmax.f32 %v354, 0.0
        %v360 = vld [vmem:[%s3] sm:$0xff]
        %v361 = vld [vmem:[%s3 + $0x8] sm:$0xff]
        %v362 = vld [vmem:[%s3 + $0x10] sm:$0xff]
        %v363 = vld [vmem:[%s3 + $0x18] sm:$0xff]
        %v364 = vld [vmem:[%s3 + $0x20] sm:$0xff]
        %v365 = vld [vmem:[%s3 + $0x28] sm:$0xff]
        %v366 = vld [vmem:[%s3 + $0x30] sm:$0xff]
        %v367 = vld [vmem:[%s3 + $0x38] sm:$0xff]
        %v368 = vld [vmem:[%s4] sm:$0x1]
        %v370 = vperm.slane %v368, 0
        %vm372 = vcmask 523264
        %v374 = vsel %vm372, %v356, 0
        %v377 = vsel %vm372, %v357, 0
        %v380 = vsel %vm372, %v358, 0
        %v383 = vsel %vm372, %v359, 0
        %385 = vmatpush.msra.mxu0 0.0
        %386 = vmatpush.msra.mxu0 0.0
        %387 = vmatpush.msra.mxu0 0.0
        %388 = vmatpush.msra.mxu0 0.0
        %389 = vmatpush.msra.mxu0 0.0
        %390 = vmatpush.msra.mxu0 0.0
        %391 = vmatpush.msra.mxu0 0.0
        %392 = vmatpush.msra.mxu0 0.0
        %393 = vmatpush.msra.mxu0 %v367
        %394 = vmatpush.msra.mxu0 %v366
        %395 = vmatpush.msra.mxu0 %v365
        %396 = vmatpush.msra.mxu0 %v364
        %397 = vmatpush.msra.mxu0 %v363
        %398 = vmatpush.msra.mxu0 %v362
        %399 = vmatpush.msra.mxu0 %v361
        %400 = vmatpush.msra.mxu0 %v360
        %401 = vmatmul.f32.gmra.mxu0 %v374
        %v402 = vpop.f32.mrf.mxu0
        %v403 = vadd.f32 %v370, %v402
        %404 = vmatmul.f32.gmra.mxu0 %v377
        %v405 = vpop.f32.mrf.mxu0
        %v406 = vadd.f32 %v370, %v405
        %407 = vmatmul.f32.gmra.mxu0 %v380
        %v408 = vpop.f32.mrf.mxu0
        %v409 = vadd.f32 %v370, %v408
        %410 = vmatmul.f32.gmra.mxu0 %v383
        %v411 = vpop.f32.mrf.mxu0
        %v412 = vadd.f32 %v370, %v411
        %413 = vdwg.mxu0
        %vm414 = vcmask 15360
        %415 = vst.msk [vmem:[%s231] sm:$0xff] %vm414, %v403
        %416 = vst.msk [vmem:[%s231 + $0x8] sm:$0xff] %vm414, %v406
        %417 = vst.msk [vmem:[%s231 + $0x10] sm:$0xff] %vm414, %v409
        %418 = vst.msk [vmem:[%s231 + $0x18] sm:$0xff] %vm414, %v412
        %s419 = sand.u32 %s134, 1
        %s420 = sand.u32 %s134, 1
        %s421 = smul.addr %s420, 32
        %s422 = scalar_lea.vmem [#allocation2], %s421
        // Predicated region
        $region41: #{eva_classifier_forward.1} parent=39 // pred_check
          %p423 = pneg %p144
        $region42: #{eva_classifier_forward.1} parent=39 // pred_check_branch
          %425 = sbr.rel (%p423) target = $region44
        $region43: #{eva_classifier_forward.1} parent=39 // pred_region
          %s426 = smul.u32 4, %s16
          %s427 = ssub.s32 13, %s426
          %p428 = scmp.lt.s32.totalorder %s427, 4
          %s429 = scalar_select %p428, %s427, 4
          %s430 = smul.u32 8, %s429
          %p431 = scmp.ne.s32.totalorder 0, %s430
          %s432 = smul.addr %s426, 8
          %s433 = scalar_lea.vmem %s5, %s432
          // Predicated region
          $region45: #{eva_classifier_forward.1} parent=43 // pred_check
            %p434 = pneg %p431
          $region46: #{eva_classifier_forward.1} parent=43 // pred_check_branch
            %436 = sbr.rel (%p434) target = $region48
          $region47: #{eva_classifier_forward.1} parent=43 // pred_region
            // Predicated region
            $region49: #{eva_classifier_forward.1} parent=47 // pred_check
              _
            $region50: #{eva_classifier_forward.1} parent=47 // pred_check_branch
              %438 = sbr.rel (0) target = $region52
            $region51: #{eva_classifier_forward.1} parent=47 // pred_region
              // Predicated region
              $region71: #{eva_classifier_forward.1} parent=51 // pred_check
                _
              $region72: #{eva_classifier_forward.1} parent=51 // pred_check_branch
                %494 = sbr.rel (0) target = $region74
              $region73: #{eva_classifier_forward.1} parent=51 // pred_region
                %s495 = sshrl.u32 %s429, 2
                // While loop
                $region75: #{eva_classifier_forward.1} parent=73 // loop_pre_header
                  _
                $region76: #{eva_classifier_forward.1} parent=73 // loop_header
                  %s497 = sphi 0, %s499
                  %p498 = scmp.ge.s32.totalorder %s497, %s495
                  %s502 = sphi 0, %s515
                  %s503 = sphi %s422, %s518
                  %s504 = sphi %s433, %s519
                $region77: #{eva_classifier_forward.1} parent=73 // loop_header_branch
                  %501 = sbr.rel (%p498) target = $region81
                $region78: #{eva_classifier_forward.1} parent=73 // loop_body
                  %v505 = vld [vmem:[%s503] sm:$0xff]
                  %506 = vst [vmem:[%s504] sm:$0xff] %v505
                  %v507 = vld [vmem:[%s503 + $0x8] sm:$0xff]
                  %508 = vst [vmem:[%s504 + $0x8] sm:$0xff] %v507
                  %v509 = vld [vmem:[%s503 + $0x10] sm:$0xff]
                  %510 = vst [vmem:[%s504 + $0x10] sm:$0xff] %v509
                  %v511 = vld [vmem:[%s503 + $0x18] sm:$0xff]
                  %512 = vst [vmem:[%s504 + $0x18] sm:$0xff] %v511
                  %s513 = sadd.s32 1, %s502
                  %p514 = scmp.ge.s32.totalorder %s513, %s495
                  %s515 = scalar_select %p514, 0, %s513
                  %s516 = smul.u32 %s515, 32
                  %s517 = smul.u32 %s515, 32
                  %s518 = scalar_lea.vmem %s422, %s516 [#allocation2]
                  %s519 = scalar_lea.vmem %s433, %s517
                $region79: #{eva_classifier_forward.1} parent=73 // loop_footer
                  %s499 = sadd.s32 %s497, 1
                $region80: #{eva_classifier_forward.1} parent=73 // loop_footer_branch
                  %496 = sbr.rel target = $region76
                $region81: #{eva_classifier_forward.1} parent=73 // loop_exit
                  _
                %s520 = sshrl.u32 %s429, 2
                %s521 = sand.u32 %s429, 3
                %s522 = smul.u32 %s520, 4
                %s523 = smul.u32 8, %s522
                %s524 = scalar_lea.vmem %s422, %s523 [#allocation2]
                %s525 = smul.u32 8, %s522
                %s526 = scalar_lea.vmem %s433, %s525
                // While loop
                $region82: #{eva_classifier_forward.1} parent=73 // loop_pre_header
                  _
                $region83: #{eva_classifier_forward.1} parent=73 // loop_header
                  %s528 = sphi 0, %s530
                  %p529 = scmp.ge.s32.totalorder %s528, %s521
                  %s533 = sphi 0, %s540
                  %s534 = sphi %s524, %s543
                  %s535 = sphi %s526, %s544
                $region84: #{eva_classifier_forward.1} parent=73 // loop_header_branch
                  %532 = sbr.rel (%p529) target = $region88
                $region85: #{eva_classifier_forward.1} parent=73 // loop_body
                  %v536 = vld [vmem:[%s534] sm:$0xff]
                  %537 = vst [vmem:[%s535] sm:$0xff] %v536
                  %s538 = sadd.s32 1, %s533
                  %p539 = scmp.ge.s32.totalorder %s538, %s521
                  %s540 = scalar_select %p539, 0, %s538
                  %s541 = smul.u32 %s540, 8
                  %s542 = smul.u32 %s540, 8
                  %s543 = scalar_lea.vmem %s524, %s541 [#allocation2]
                  %s544 = scalar_lea.vmem %s526, %s542
                $region86: #{eva_classifier_forward.1} parent=73 // loop_footer
                  %s530 = sadd.s32 %s528, 1
                $region87: #{eva_classifier_forward.1} parent=73 // loop_footer_branch
                  %527 = sbr.rel target = $region83
                $region88: #{eva_classifier_forward.1} parent=73 // loop_exit
                  _
              $region74: #{eva_classifier_forward.1} parent=51 // pred_fallthru
                _
              // Predicated region
              $region89: #{eva_classifier_forward.1} parent=51 // pred_check
                _
              $region90: #{eva_classifier_forward.1} parent=51 // pred_check_branch
                %546 = sbr.rel target = $region92
              $region91: #{eva_classifier_forward.1} parent=51 // pred_region
                _
              $region92: #{eva_classifier_forward.1} parent=51 // pred_fallthru
                _
            $region52: #{eva_classifier_forward.1} parent=47 // pred_fallthru
              _
            // Predicated region
            $region53: #{eva_classifier_forward.1} parent=47 // pred_check
              _
            $region54: #{eva_classifier_forward.1} parent=47 // pred_check_branch
              %440 = sbr.rel target = $region56
            $region55: #{eva_classifier_forward.1} parent=47 // pred_region
              %s442 = ssub.s32 256, 1
              %s443 = sshrl.u32 %s429, 2
              // While loop
              $region57: #{eva_classifier_forward.1} parent=55 // loop_pre_header
                _
              $region58: #{eva_classifier_forward.1} parent=55 // loop_header
                %s445 = sphi 0, %s447
                %p446 = scmp.ge.s32.totalorder %s445, %s443
                %s450 = sphi 0, %s463
                %s451 = sphi %s422, %s466
                %s452 = sphi %s433, %s467
              $region59: #{eva_classifier_forward.1} parent=55 // loop_header_branch
                %449 = sbr.rel (%p446) target = $region63
              $region60: #{eva_classifier_forward.1} parent=55 // loop_body
                %v453 = vld [vmem:[%s451] sm:%s442]
                %454 = vst [vmem:[%s452] sm:%s442] %v453
                %v455 = vld [vmem:[%s451 + $0x8] sm:%s442]
                %456 = vst [vmem:[%s452 + $0x8] sm:%s442] %v455
                %v457 = vld [vmem:[%s451 + $0x10] sm:%s442]
                %458 = vst [vmem:[%s452 + $0x10] sm:%s442] %v457
                %v459 = vld [vmem:[%s451 + $0x18] sm:%s442]
                %460 = vst [vmem:[%s452 + $0x18] sm:%s442] %v459
                %s461 = sadd.s32 1, %s450
                %p462 = scmp.ge.s32.totalorder %s461, %s443
                %s463 = scalar_select %p462, 0, %s461
                %s464 = smul.u32 %s463, 32
                %s465 = smul.u32 %s463, 32
                %s466 = scalar_lea.vmem %s422, %s464 [#allocation2]
                %s467 = scalar_lea.vmem %s433, %s465
              $region61: #{eva_classifier_forward.1} parent=55 // loop_footer
                %s447 = sadd.s32 %s445, 1
              $region62: #{eva_classifier_forward.1} parent=55 // loop_footer_branch
                %444 = sbr.rel target = $region58
              $region63: #{eva_classifier_forward.1} parent=55 // loop_exit
                _
              %s468 = sshrl.u32 %s429, 2
              %s469 = sand.u32 %s429, 3
              %s470 = smul.u32 %s468, 4
              %s471 = smul.u32 8, %s470
              %s472 = scalar_lea.vmem %s422, %s471 [#allocation2]
              %s473 = smul.u32 8, %s470
              %s474 = scalar_lea.vmem %s433, %s473
              // While loop
              $region64: #{eva_classifier_forward.1} parent=55 // loop_pre_header
                _
              $region65: #{eva_classifier_forward.1} parent=55 // loop_header
                %s476 = sphi 0, %s478
                %p477 = scmp.ge.s32.totalorder %s476, %s469
                %s481 = sphi 0, %s488
                %s482 = sphi %s472, %s491
                %s483 = sphi %s474, %s492
              $region66: #{eva_classifier_forward.1} parent=55 // loop_header_branch
                %480 = sbr.rel (%p477) target = $region70
              $region67: #{eva_classifier_forward.1} parent=55 // loop_body
                %v484 = vld [vmem:[%s482] sm:%s442]
                %485 = vst [vmem:[%s483] sm:%s442] %v484
                %s486 = sadd.s32 1, %s481
                %p487 = scmp.ge.s32.totalorder %s486, %s469
                %s488 = scalar_select %p487, 0, %s486
                %s489 = smul.u32 %s488, 8
                %s490 = smul.u32 %s488, 8
                %s491 = scalar_lea.vmem %s472, %s489 [#allocation2]
                %s492 = scalar_lea.vmem %s474, %s490
              $region68: #{eva_classifier_forward.1} parent=55 // loop_footer
                %s478 = sadd.s32 %s476, 1
              $region69: #{eva_classifier_forward.1} parent=55 // loop_footer_branch
                %475 = sbr.rel target = $region65
              $region70: #{eva_classifier_forward.1} parent=55 // loop_exit
                _
            $region56: #{eva_classifier_forward.1} parent=47 // pred_fallthru
              _
          $region48: #{eva_classifier_forward.1} parent=43 // pred_fallthru
            _
          %547 = vnop
        $region44: #{eva_classifier_forward.1} parent=39 // pred_fallthru
          _
      $region40: #{eva_classifier_forward.1} parent=5 // pred_fallthru
        _
      %p548 = scmp.le.s32.totalorder 2, %s11
      // Predicated region
      $region93: #{eva_classifier_forward.1} parent=5 // pred_check
        %p549 = pneg %p548
      $region94: #{eva_classifier_forward.1} parent=5 // pred_check_branch
        %551 = sbr.rel (%p549) target = $region96
      $region95: #{eva_classifier_forward.1} parent=5 // pred_region
        %s552 = ssub.s32 %s11, 2
        // Predicated region
        $region97: #{eva_classifier_forward.1} parent=95 // pred_check
          %p553 = pneg %p150
        $region98: #{eva_classifier_forward.1} parent=95 // pred_check_branch
          %555 = sbr.rel (%p553) target = $region100
        $region99: #{eva_classifier_forward.1} parent=95 // pred_region
          %s556 = sand.u32 %s135, 1
          %s557 = sand.u32 %s135, 1
          %s558 = smul.addr %s557, 32
          %s559 = scalar_lea.vmem [#allocation2], %s558
        $region100: #{eva_classifier_forward.1} parent=95 // pred_fallthru
          _
      $region96: #{eva_classifier_forward.1} parent=5 // pred_fallthru
        _
    $region6: #{eva_classifier_forward.1} parent=1 // loop_footer
      %s15 = sadd.s32 1, %s11
    $region7: #{eva_classifier_forward.1} parent=1 // loop_footer_branch
      %10 = sbr.rel target = $region3
    $region8: #{eva_classifier_forward.1} parent=1 // loop_exit
      _

</llo_original>
